<compile_context>
chip_gen: v7x
topology: tpu7x:2x2x1
jax: 0.10.0
libtpu: 0.0.40
codegen_flags: <defaults>
</compile_context>

<pallas_src>
import functools

import jax
import jax.numpy as jnp
from jax.experimental import pallas as pl
from jax.experimental.pallas import tpu as pltpu


# --------------------------------------------------------------------------------------
# Kernel
# --------------------------------------------------------------------------------------
def _pooling_kernel(x_ref, o_ref, acc_ref, m_ref, l_ref, *, pool_type: str, inv_s: float):
    """x_ref: (TB, TS, E) block. o_ref: (TB, E).  Reduces over the S grid axis (axis 1)."""
    s = pl.program_id(1)
    last = pl.num_programs(1) - 1

    # Accumulate in f32 regardless of input dtype (bf16-safe, incl. v5e's f32-only VPU).
    x = x_ref[...].astype(jnp.float32)                        # (TB, TS, E)

    if pool_type == "max":
        @pl.when(s == 0)
        def _():
            acc_ref[...] = jnp.full_like(acc_ref, -jnp.inf)

        acc_ref[...] = jnp.maximum(acc_ref[...], jnp.max(x, axis=1))

        @pl.when(s == last)
        def _():
            o_ref[...] = acc_ref[...].astype(o_ref.dtype)

    elif pool_type == "mean":
        @pl.when(s == 0)
        def _():
            acc_ref[...] = jnp.zeros_like(acc_ref)

        acc_ref[...] = acc_ref[...] + jnp.sum(x, axis=1)

        @pl.when(s == last)
        def _():
            o_ref[...] = (acc_ref[...] * inv_s).astype(o_ref.dtype)

    elif pool_type == "attention":
        # Online softmax over the S axis:
        #   logits_{b,s} = sum_e x_{b,s,e};  w = softmax_s(logits);  out = sum_s w * x.
        @pl.when(s == 0)
        def _():
            acc_ref[...] = jnp.zeros_like(acc_ref)
            m_ref[...] = jnp.full_like(m_ref, -jnp.inf)
            l_ref[...] = jnp.zeros_like(l_ref)

        logits = jnp.sum(x, axis=-1, keepdims=True)           # (TB, TS, 1) lane reduce
        m_prev = m_ref[...]                                    # (TB, 1)
        m_new = jnp.maximum(m_prev, jnp.max(logits, axis=1))   # (TB, 1)
        alpha = jnp.exp(m_prev - m_new)                        # (TB, 1)
        p = jnp.exp(logits - m_new[:, None, :])                # (TB, TS, 1)
        l_ref[...] = alpha * l_ref[...] + jnp.sum(p, axis=1)   # (TB, 1)
        acc_ref[...] = alpha * acc_ref[...] + jnp.sum(x * p, axis=1)   # (TB, E)
        m_ref[...] = m_new

        @pl.when(s == last)
        def _():
            # Exact division (denominator is only TB scalars; approx recip not worth it).
            o_ref[...] = (acc_ref[...] / l_ref[...]).astype(o_ref.dtype)

    else:
        raise ValueError(f"unknown pool_type: {pool_type}")


# --------------------------------------------------------------------------------------
# Tile selection (8-aligned sublanes, ~MiB-scale blocks, >=2 batch steps when possible)
# --------------------------------------------------------------------------------------
def _pick_batch_tile(B, S, E, itemsize, align, target_bytes):
    # Must divide B and be a multiple of `align` (sublane rows) or equal B itself.
    cands = [d for d in range(align, B + 1, align) if B % d == 0]
    if not cands:
        return B  # tiny batch: full dim satisfies the (8,128) rule
    fit = [d for d in cands if d * S * E * itemsize <= target_bytes]
    if fit:
        multi = [d for d in fit if B // d >= 2]   # prefer >=2 grid steps (v7x megacore)
        return max(multi) if multi else max(fit)
    return min(cands)  # even the smallest aligned tile exceeds target -> tile S too


def _pick_s_tile(S, batch_tile, E, itemsize, align, target_bytes):
    if batch_tile * S * E * itemsize <= target_bytes:
        return S
    cands = [d for d in range(align, S + 1, align)
             if S % d == 0 and batch_tile * d * E * itemsize <= target_bytes]
    if cands:
        return max(cands)
    cands = [d for d in range(align, S + 1, align) if S % d == 0]
    return min(cands) if cands else S


# --------------------------------------------------------------------------------------
# Wrapper
# --------------------------------------------------------------------------------------
def pooling_layer(x, pool_type: str = "max", *, target_block_bytes: int = 2 << 20):
    """Pallas implementation of PoolingLayer.forward.

    x: (B, S, E) f32/bf16 -> (B, E);  2-D x is returned unchanged.
    """
    if x.ndim == 2:
        # PyTorch early-return branch: identity for 2-D inputs (no kernel launch).
        return x

    B, S, E = x.shape
    itemsize = jnp.dtype(x.dtype).itemsize
    align = 16 if itemsize == 2 else 8          # bf16 packs 16 rows / sublane vreg

    batch_tile = _pick_batch_tile(B, S, E, itemsize, align, target_block_bytes)
    s_tile = _pick_s_tile(S, batch_tile, E, itemsize, align, target_block_bytes)

    assert B % batch_tile == 0 and S % s_tile == 0
    assert batch_tile == B or batch_tile % align == 0, "batch_tile must be sublane-aligned"
    assert s_tile == S or s_tile % align == 0, "s_tile must be sublane-aligned"

    kernel = functools.partial(_pooling_kernel, pool_type=pool_type, inv_s=1.0 / S)

    flops = (4 if pool_type == "attention" else 1) * B * S * E
    transcendentals = B * S if pool_type == "attention" else 0
    bytes_accessed = B * S * E * itemsize + B * E * itemsize

    return pl.pallas_call(
        kernel,
        out_shape=jax.ShapeDtypeStruct((B, E), x.dtype),
        grid_spec=pltpu.PrefetchScalarGridSpec(
            num_scalar_prefetch=0,
            grid=(B // batch_tile, S // s_tile),          # reduction (S) axis last
            in_specs=[pl.BlockSpec((batch_tile, s_tile, E), lambda i, s: (i, s, 0))],
            out_specs=pl.BlockSpec((batch_tile, E), lambda i, s: (i, 0)),
            scratch_shapes=[
                pltpu.VMEM((batch_tile, E), jnp.float32),   # running max / sum / weighted sum
                pltpu.VMEM((batch_tile, 1), jnp.float32),   # online-softmax running max
                pltpu.VMEM((batch_tile, 1), jnp.float32),   # online-softmax running denom
            ],
        ),
        compiler_params=pltpu.CompilerParams(
            dimension_semantics=("parallel", "arbitrary"),  # batch shards across TCs (v7x)
        ),
        cost_estimate=pl.CostEstimate(
            flops=flops, transcendentals=transcendentals, bytes_accessed=bytes_accessed
        ),
    )(x)


# --------------------------------------------------------------------------------------
# Pure-JAX reference mirroring the PyTorch module
# --------------------------------------------------------------------------------------
def _reference(x, pool_type: str = "max"):
    if x.ndim == 2:
        return x
    if pool_type == "max":
        return jnp.max(x, axis=1)
    if pool_type == "mean":
        return jnp.mean(x, axis=1)
    if pool_type == "attention":
        w = jax.nn.softmax(jnp.sum(x, axis=-1, keepdims=True), axis=1)
        return jnp.sum(x * w, axis=1)
    raise ValueError(pool_type)


if __name__ == "__main__":
    key = jax.random.PRNGKey(0)
    k1, k2, k3 = jax.random.split(key, 3)

    # Small canonical shape (whole tensor fits one block; lane-dense E=128).
    B, S, E = 2, 8, 128
    x_small = jax.random.normal(k1, (B, S, E), dtype=jnp.float32)

    # Larger shape with a tiny block-byte target to exercise both the batch ("parallel")
    # and S ("arbitrary" reduction / online-softmax) tiling paths on hardware.
    Bl, Sl, El = 16, 64, 128
    x_large = jax.random.normal(k2, (Bl, Sl, El), dtype=jnp.float32)

    tol = {"max": 1e-6, "mean": 1e-5, "attention": 1e-4}

    for pt in ("max", "mean", "attention"):
        out = jax.block_until_ready(pooling_layer(x_small, pt))
        ref = _reference(x_small, pt)
        assert out.shape == (B, E), (pt, out.shape)
        assert jnp.allclose(out, ref, atol=tol[pt], rtol=tol[pt]), f"small mismatch for {pt}"

        out_l = jax.block_until_ready(
            pooling_layer(x_large, pt, target_block_bytes=64 * 1024)
        )
        ref_l = _reference(x_large, pt)
        assert out_l.shape == (Bl, El), (pt, out_l.shape)
        assert jnp.allclose(out_l, ref_l, atol=tol[pt], rtol=tol[pt]), f"large mismatch for {pt}"

    # bf16 input path (accumulated in f32 inside the kernel).
    x_bf16 = x_small.astype(jnp.bfloat16)
    out_bf = jax.block_until_ready(pooling_layer(x_bf16, "mean"))
    ref_bf = _reference(x_bf16, "mean")
    assert jnp.allclose(out_bf.astype(jnp.float32), ref_bf.astype(jnp.float32),
                        atol=1e-2, rtol=1e-2), "bf16 mean mismatch"

    # 2-D inputs pass straight through (matches the PyTorch early return).
    x2 = jax.random.normal(k3, (B, E), dtype=jnp.float32)
    out2 = jax.block_until_ready(pooling_layer(x2, "max"))
    assert jnp.allclose(out2, x2)

    print("KERNEL_OK")
</pallas_src>

<mosaic_0001>
module attributes {stable_mosaic.version = 11 : i64} {
  func.func @_pooling_kernel(%arg0: i32, %arg1: i32, %arg2: memref<2x8x128xf32, #tpu.memory_space<vmem>>, %arg3: memref<2x128xf32, #tpu.memory_space<vmem>>, %arg4: memref<2x128xf32, #tpu.memory_space<vmem>>, %arg5: memref<2x1xf32, #tpu.memory_space<vmem>>, %arg6: memref<2x1xf32, #tpu.memory_space<vmem>>) attributes {dimension_semantics = [#tpu.dimension_semantics<parallel>, #tpu.dimension_semantics<arbitrary>], iteration_bounds = array<i64: 1, 1>, scalar_prefetch = 0 : i64, scratch_operands = 3 : i64, tpu.core_type = #tpu.core_type<tc>, window_params = [{transform_indices = @transform_0, window_bounds = array<i64: 2, 8, 128>}, {transform_indices = @transform_1, window_bounds = array<i64: 2, 128>}]} {
    %c0 = arith.constant 0 : index
    %c0_0 = arith.constant 0 : index
    %c0_1 = arith.constant 0 : index
    %0 = vector.load %arg2[%c0, %c0_0, %c0_1] : memref<2x8x128xf32, #tpu.memory_space<vmem>>, vector<2x8x128xf32>
    %c0_i32 = arith.constant 0 : i32
    %1 = arith.cmpi eq, %arg1, %c0_i32 : i32
    %2 = arith.extui %1 : i1 to i32
    %c0_i32_2 = arith.constant 0 : i32
    %3 = arith.cmpi ne, %2, %c0_i32_2 : i32
    scf.if %3 {
      %cst_9 = arith.constant 0xFF800000 : f32
      %11 = vector.broadcast %cst_9 : f32 to vector<2x128xf32>
      %c0_10 = arith.constant 0 : index
      %c0_11 = arith.constant 0 : index
      %12 = vector.load %arg4[%c0_10, %c0_11] : memref<2x128xf32, #tpu.memory_space<vmem>>, vector<2x128xf32>
      tpu.vector_store %arg4[%c0_10, %c0_11], %11 {strides = array<i32>} : memref<2x128xf32, #tpu.memory_space<vmem>>, vector<2x128xf32>,
    } else {
    }
    %c0_3 = arith.constant 0 : index
    %c0_4 = arith.constant 0 : index
    %4 = vector.load %arg4[%c0_3, %c0_4] : memref<2x128xf32, #tpu.memory_space<vmem>>, vector<2x128xf32>
    %cst = arith.constant dense<0xFF800000> : vector<2x128xf32>
    %5 = vector.multi_reduction <maximumf>, %0, %cst [1] : vector<2x8x128xf32> to vector<2x128xf32>
    %6 = arith.maximumf %4, %5 : vector<2x128xf32>
    %c0_5 = arith.constant 0 : index
    %c0_6 = arith.constant 0 : index
    %7 = vector.load %arg4[%c0_5, %c0_6] : memref<2x128xf32, #tpu.memory_space<vmem>>, vector<2x128xf32>
    tpu.vector_store %arg4[%c0_5, %c0_6], %6 {strides = array<i32>} : memref<2x128xf32, #tpu.memory_space<vmem>>, vector<2x128xf32>,
    %c0_i32_7 = arith.constant 0 : i32
    %8 = arith.cmpi eq, %arg1, %c0_i32_7 : i32
    %9 = arith.extui %8 : i1 to i32
    %c0_i32_8 = arith.constant 0 : i32
    %10 = arith.cmpi ne, %9, %c0_i32_8 : i32
    scf.if %10 {
      %c0_9 = arith.constant 0 : index
      %c0_10 = arith.constant 0 : index
      %11 = vector.load %arg4[%c0_9, %c0_10] : memref<2x128xf32, #tpu.memory_space<vmem>>, vector<2x128xf32>
      %c0_11 = arith.constant 0 : index
      %c0_12 = arith.constant 0 : index
      %12 = vector.load %arg3[%c0_11, %c0_12] : memref<2x128xf32, #tpu.memory_space<vmem>>, vector<2x128xf32>
      tpu.vector_store %arg3[%c0_11, %c0_12], %11 {strides = array<i32>} : memref<2x128xf32, #tpu.memory_space<vmem>>, vector<2x128xf32>,
    } else {
    }
    return
  }
  func.func @transform_0(%arg0: i32, %arg1: i32) -> (i32, i32, i32) {
    %c0_i32 = arith.constant 0 : i32
    %c0_i32_0 = arith.constant 0 : i32
    return %arg0, %arg1, %c0_i32 : i32, i32, i32
  }
  func.func @transform_1(%arg0: i32, %arg1: i32) -> (i32, i32) {
    %c0_i32 = arith.constant 0 : i32
    %c0_i32_0 = arith.constant 0 : i32
    return %arg0, %c0_i32 : i32, i32
  }
}

</mosaic_0001>

<llo_original>
// kernel: tpu_custom_call.1
$region0: #{tpu_custom_call.1}
  #allocation0 [shape = 'u32[]', space=smem, size = 0x4, offset = 0x4, fixed_abs, tag = 'smem constant byte address 0x4 - core index']
  #allocation1 [shape = 'u32[144,128]{1,0:T(1,128)}', space=vmem, size = 0x12000, scoped, tag = 'internal scratch']
  #allocation2 [shape = 'f32[2,128]{1,0:T(2,128)}', space=vmem, size = 0x400, scoped, tag = 'scratch operand']
  #allocation3 [shape = 'f32[2,1]{1,0:T(2,128)}', space=vmem, size = 0x400, scoped, tag = 'scratch operand']
  #allocation4 [shape = 'f32[2,1]{1,0:T(2,128)}', space=vmem, size = 0x400, scoped, tag = 'scratch operand']
  %s0 = inlined_call_operand.hbm [shape: f32[2,8,128], index: 0, kind: input, shape index: {}]
  %s1 = inlined_call_operand.hbm [shape: f32[2,128], index: 1, kind: output, shape index: {}]
  %s2 = sld [smem:[#allocation0]]
  $region26: #{tpu_custom_call.1} parent=0
    _
  %s4 = ssub.s32 1, %s2
  %s5 = scalar_select 0, %s4, %s2
  $region1: #{tpu_custom_call.1} parent=0
    #allocation5 [shape = 'u8[8192]{0}', space=vmem, size = 0x2000, scoped, tag = 'input window, operand 0, single buffered']
    #allocation6 [shape = 's32[1]{0}', space=sflag, size = 0x4, scoped, tag = 'scoped memory for tpu_custom_call.1']
    #allocation7 [shape = 's32[1]{0}', space=sflag, size = 0x4, scoped, tag = 'scoped memory for tpu_custom_call.1']
    #allocation8 [shape = 'u8[1024]{0}', space=vmem, size = 0x400, scoped, tag = 'output window, operand 0, single buffered']
    %6 = vsyncpa [#allocation6], 0
    %7 = vsyncpa [#allocation7], 0
    // Predicated region
    $region2: #{tpu_custom_call.1} parent=1 // pred_check
      _
    $region3: #{tpu_custom_call.1} parent=1 // pred_check_branch
      %9 = sbr.rel (0) target = $region5
    $region4: #{tpu_custom_call.1} parent=1 // pred_region
      %s11 = ssub.s32 256, 256
      %12 = vsyncadd [#allocation6], %s11
      %s13 = sshll.u32 [#allocation5], 4
      %s14 = int_to_ptr.vmem [resolvable:$true] %s13
      %19 = dma.hbm_to_vmem [thread:$0]  %s0, 256, %s14, [#allocation6], 128, 128, 8
    $region5: #{tpu_custom_call.1} parent=1 // pred_fallthru
      _
    // Predicated region
    $region6: #{tpu_custom_call.1} parent=1 // pred_check
      _
    $region7: #{tpu_custom_call.1} parent=1 // pred_check_branch
      %21 = sbr.rel (0) target = $region9
    $region8: #{tpu_custom_call.1} parent=1 // pred_region
      %22 = dma.done [#allocation6], 256
    $region9: #{tpu_custom_call.1} parent=1 // pred_fallthru
      _
    %v23 = vld [vmem:[#allocation5] sm:$0xff]
    %v24 = vld [vmem:[#allocation5 + $0x8] sm:$0xff]
    %p25 = scmp.eq.s32.totalorder 0, 0
    // Predicated region
    $region10: #{tpu_custom_call.1} parent=1 // pred_check
      %p26 = pneg %p25
    $region11: #{tpu_custom_call.1} parent=1 // pred_check_branch
      %28 = sbr.rel (%p26) target = $region13
    $region12: #{tpu_custom_call.1} parent=1 // pred_region
      %29 = vst [vmem:[#allocation2] sm:$0x3] -inf
    $region13: #{tpu_custom_call.1} parent=1 // pred_fallthru
      _
    %v30 = vld [vmem:[#allocation2] sm:$0x3]
    %v31 = vrot.slane %v23, 4
    %v32 = vmax.f32 %v23, %v31
    %v33 = vrot.slane %v32, 2
    %v34 = vmax.f32 %v32, %v33
    %v35 = vrot.slane %v34, 1
    %v36 = vmax.f32 %v34, %v35
    %v37 = vrot.slane %v24, 4
    %v38 = vmax.f32 %v24, %v37
    %v39 = vrot.slane %v38, 2
    %v40 = vmax.f32 %v38, %v39
    %v41 = vrot.slane %v40, 1
    %v42 = vmax.f32 %v40, %v41
    %vm45 = vcmask 1041409
    %v46 = vsel %vm45, %v42, %v36
    %v48 = vmax.f32 %v30, %v46
    %49 = vst [vmem:[#allocation2] sm:$0x3] %v48
    // Predicated region
    $region14: #{tpu_custom_call.1} parent=1 // pred_check
      %p50 = pneg %p25
    $region15: #{tpu_custom_call.1} parent=1 // pred_check_branch
      %52 = sbr.rel (%p50) target = $region17
    $region16: #{tpu_custom_call.1} parent=1 // pred_region
      %v53 = vld [vmem:[#allocation2] sm:$0x3]
      %54 = vst [vmem:[#allocation8] sm:$0x3] %v53
    $region17: #{tpu_custom_call.1} parent=1 // pred_fallthru
      _
    // Predicated region
    $region18: #{tpu_custom_call.1} parent=1 // pred_check
      _
    $region19: #{tpu_custom_call.1} parent=1 // pred_check_branch
      %56 = sbr.rel (0) target = $region21
    $region20: #{tpu_custom_call.1} parent=1 // pred_region
      %s58 = ssub.s32 32, 32
      %59 = vsyncadd [#allocation7], %s58
      %s61 = sshll.u32 [#allocation8], 4
      %s62 = int_to_ptr.vmem [resolvable:$true] %s61
      %64 = dma.vmem_to_hbm [thread:$0]  %s62, 32, %s1, [#allocation7]
    $region21: #{tpu_custom_call.1} parent=1 // pred_fallthru
      _
    // Predicated region
    $region22: #{tpu_custom_call.1} parent=1 // pred_check
      _
    $region23: #{tpu_custom_call.1} parent=1 // pred_check_branch
      %66 = sbr.rel (0) target = $region25
    $region24: #{tpu_custom_call.1} parent=1 // pred_region
      %67 = dma.done [#allocation7], 32
    $region25: #{tpu_custom_call.1} parent=1 // pred_fallthru
      _
    %68 = vsyncpa [#allocation6], 1
    %69 = vsyncpa [#allocation7], 1

</llo_original>
